<compile_context>
chip_gen: v7x
topology: tpu7x:2x2x1
jax: 0.10.0
libtpu: 0.0.40
codegen_flags: <defaults>
</compile_context>

<pallas_src>
import jax
import jax.numpy as jnp
from jax.experimental import pallas as pl
from jax.experimental.pallas import tpu as pltpu

_MAX_TILE_BYTES = 2 * 1024 * 1024   # cap per f32 tile buffer (in + out, double-buffered => ~8 MiB VMEM)
_MAX_TILE_COLS = 4096               # lane-dim tile cap (multiple of 128)


def _actnorm_fwd_kernel(mult_ref, bias_ref, x_ref, o_ref):
    # mult_ref / bias_ref: (TILE_R, 1) f32, broadcast along lanes.
    x = x_ref[...].astype(jnp.float32)
    o_ref[...] = (x * mult_ref[...] + bias_ref[...]).astype(o_ref.dtype)


def _actnorm_rev_kernel(mult_ref, bias_ref, x_ref, o_ref):
    # mult_ref holds exp(-scale) (precomputed in the wrapper).
    x = x_ref[...].astype(jnp.float32)
    o_ref[...] = ((x - bias_ref[...]) * mult_ref[...]).astype(o_ref.dtype)


def _choose_tiles(rows, cols, itemsize):
    """Pick (TILE_R, TILE_C): lane-dense, (8,128)-aligned, VMEM-safe on all gens."""
    # Lane (last) dim: multiple of 128, or the full extent.
    if cols % 128 == 0:
        tile_c = min(cols, _MAX_TILE_COLS)
    else:
        tile_c = cols
    # Sublane (second-to-last) dim: multiple of the sublane pack, or full extent.
    sub = 8 if itemsize >= 4 else (16 if itemsize == 2 else 32)
    if rows <= sub:
        tile_r = rows
    else:
        max_r = max(sub, _MAX_TILE_BYTES // max(1, tile_c * 4))
        tile_r = min(rows, max_r)
        tile_r = max(sub, (tile_r // sub) * sub)
    return tile_r, tile_c


def actnorm_forward(x, scale, bias, rev=False):
    """x: (N, C, H, W); scale/bias: (1, C, 1, 1). Returns (N, C, H, W)."""
    N, C, H, W = x.shape
    R, COLS = N * C, H * W
    itemsize = jnp.dtype(x.dtype).itemsize

    # Flatten to (N*C, H*W): rows are (n, c) with c fastest, so row r <-> channel r % C.
    x2 = x.reshape(R, COLS)

    # Hoist exp(scale) out of the kernel; keep parameter math in f32.
    scale_c = scale.reshape(C).astype(jnp.float32)
    bias_c = bias.reshape(C).astype(jnp.float32)
    mult_c = jnp.exp(-scale_c) if rev else jnp.exp(scale_c)
    mult_rows = jnp.tile(mult_c, N).reshape(R, 1)
    bias_rows = jnp.tile(bias_c, N).reshape(R, 1)

    tile_r, tile_c = _choose_tiles(R, COLS, itemsize)
    grid = (pl.cdiv(R, tile_r), pl.cdiv(COLS, tile_c))

    kernel = _actnorm_rev_kernel if rev else _actnorm_fwd_kernel

    y2 = pl.pallas_call(
        kernel,
        out_shape=jax.ShapeDtypeStruct((R, COLS), x.dtype),
        grid_spec=pltpu.PrefetchScalarGridSpec(
            num_scalar_prefetch=0,
            grid=grid,
            in_specs=[
                pl.BlockSpec((tile_r, 1), lambda i, j: (i, 0)),       # exp(+/-scale) per row
                pl.BlockSpec((tile_r, 1), lambda i, j: (i, 0)),       # bias per row
                pl.BlockSpec((tile_r, tile_c), lambda i, j: (i, j)),  # x tile (lane-dense)
            ],
            out_specs=pl.BlockSpec((tile_r, tile_c), lambda i, j: (i, j)),
        ),
        compiler_params=pltpu.CompilerParams(
            dimension_semantics=("parallel", "parallel"),
            vmem_limit_bytes=32 * 1024 * 1024,
        ),
        cost_estimate=pl.CostEstimate(
            flops=2 * x.size,
            transcendentals=0,
            bytes_accessed=2 * x.size * itemsize,
        ),
    )(mult_rows, bias_rows, x2)

    return y2.reshape(N, C, H, W)


def actnorm_jacobian(x, scale):
    """jac = H * W * sum_c(scale) per batch element (matches PyTorch .jacobian)."""
    N, C, H, W = x.shape
    # tiny reduction over C; plain JAX glue, not a hot path
    return jnp.full((N,), float(H * W), dtype=scale.dtype) * jnp.sum(scale)


if __name__ == "__main__":
    key = jax.random.PRNGKey(0)
    k_x, k_s, k_b, k_x2 = jax.random.split(key, 4)

    # Primary shape (module's Actnorm blocks act on NCHW activations).
    N, C, H, W = 2, 4, 16, 16
    x = jax.random.normal(k_x, (N, C, H, W), dtype=jnp.float32)
    scale = 0.1 * jax.random.normal(k_s, (1, C, 1, 1), dtype=jnp.float32)
    bias = 0.1 * jax.random.normal(k_b, (1, C, 1, 1), dtype=jnp.float32)

    # forward
    y = jax.block_until_ready(actnorm_forward(x, scale, bias, rev=False))
    y_ref = x * jnp.exp(scale) + bias
    assert jnp.allclose(y, y_ref, atol=1e-6, rtol=1e-6), "forward mismatch"

    # reverse (invertibility)
    x_rec = jax.block_until_ready(actnorm_forward(y, scale, bias, rev=True))
    assert jnp.allclose(x_rec, x, atol=1e-5, rtol=1e-5), "reverse mismatch"

    # Secondary shape: H*W not a multiple of 128 -> exercises full-lane-dim fallback.
    N2, C2, H2, W2 = 2, 8, 12, 12
    x_b = jax.random.normal(k_x2, (N2, C2, H2, W2), dtype=jnp.float32)
    scale_b = jnp.linspace(-0.2, 0.2, C2, dtype=jnp.float32).reshape(1, C2, 1, 1)
    bias_b = jnp.linspace(0.05, -0.05, C2, dtype=jnp.float32).reshape(1, C2, 1, 1)
    y_b = jax.block_until_ready(actnorm_forward(x_b, scale_b, bias_b, rev=False))
    y_b_ref = x_b * jnp.exp(scale_b) + bias_b
    assert jnp.allclose(y_b, y_b_ref, atol=1e-6, rtol=1e-6), "forward mismatch (shape 2)"

    _ = jax.block_until_ready(actnorm_jacobian(x, scale))

    print("KERNEL_OK")
</pallas_src>

<mosaic_0001>
module attributes {stable_mosaic.version = 11 : i64} {
  func.func @_actnorm_fwd_kernel(%arg0: i32, %arg1: i32, %arg2: memref<8x1xf32, #tpu.memory_space<vmem>>, %arg3: memref<8x1xf32, #tpu.memory_space<vmem>>, %arg4: memref<8x256xf32, #tpu.memory_space<vmem>>, %arg5: memref<8x256xf32, #tpu.memory_space<vmem>>) attributes {dimension_semantics = [#tpu.dimension_semantics<parallel>, #tpu.dimension_semantics<parallel>], iteration_bounds = array<i64: 1, 1>, scalar_prefetch = 0 : i64, scratch_operands = 0 : i64, tpu.core_type = #tpu.core_type<tc>, window_params = [{transform_indices = @transform_0, window_bounds = array<i64: 8, 1>}, {transform_indices = @transform_1, window_bounds = array<i64: 8, 1>}, {transform_indices = @transform_2, window_bounds = array<i64: 8, 256>}, {transform_indices = @transform_3, window_bounds = array<i64: 8, 256>}]} {
    %c0 = arith.constant 0 : index
    %c0_0 = arith.constant 0 : index
    %0 = vector.load %arg4[%c0, %c0_0] : memref<8x256xf32, #tpu.memory_space<vmem>>, vector<8x256xf32>
    %c0_1 = arith.constant 0 : index
    %c0_2 = arith.constant 0 : index
    %1 = vector.load %arg2[%c0_1, %c0_2] : memref<8x1xf32, #tpu.memory_space<vmem>>, vector<8x1xf32>
    %2 = vector.broadcast %1 : vector<8x1xf32> to vector<8x256xf32>
    %3 = arith.mulf %0, %2 : vector<8x256xf32>
    %c0_3 = arith.constant 0 : index
    %c0_4 = arith.constant 0 : index
    %4 = vector.load %arg3[%c0_3, %c0_4] : memref<8x1xf32, #tpu.memory_space<vmem>>, vector<8x1xf32>
    %5 = vector.broadcast %4 : vector<8x1xf32> to vector<8x256xf32>
    %6 = arith.addf %3, %5 : vector<8x256xf32>
    %c0_5 = arith.constant 0 : index
    %c0_6 = arith.constant 0 : index
    %7 = vector.load %arg5[%c0_5, %c0_6] : memref<8x256xf32, #tpu.memory_space<vmem>>, vector<8x256xf32>
    tpu.vector_store %arg5[%c0_5, %c0_6], %6 {strides = array<i32>} : memref<8x256xf32, #tpu.memory_space<vmem>>, vector<8x256xf32>,
    return
  }
  func.func @transform_0(%arg0: i32, %arg1: i32) -> (i32, i32) {
    %c0_i32 = arith.constant 0 : i32
    %c0_i32_0 = arith.constant 0 : i32
    return %arg0, %c0_i32 : i32, i32
  }
  func.func @transform_1(%arg0: i32, %arg1: i32) -> (i32, i32) {
    %c0_i32 = arith.constant 0 : i32
    %c0_i32_0 = arith.constant 0 : i32
    return %arg0, %c0_i32 : i32, i32
  }
  func.func @transform_2(%arg0: i32, %arg1: i32) -> (i32, i32) {
    %c0_i32 = arith.constant 0 : i32
    return %arg0, %arg1 : i32, i32
  }
  func.func @transform_3(%arg0: i32, %arg1: i32) -> (i32, i32) {
    %c0_i32 = arith.constant 0 : i32
    return %arg0, %arg1 : i32, i32
  }
}

</mosaic_0001>

<llo_original>
// kernel: tpu_custom_call.1
$region0: #{tpu_custom_call.1}
  #allocation0 [shape = 'u32[]', space=smem, size = 0x4, offset = 0x4, fixed_abs, tag = 'smem constant byte address 0x4 - core index']
  #allocation1 [shape = 'u32[144,128]{1,0:T(1,128)}', space=vmem, size = 0x12000, scoped, tag = 'internal scratch']
  %s0 = inlined_call_operand.vmem [shape: f32[8,1], index: 0, kind: input, shape index: {}]
  %s1 = inlined_call_operand.vmem [shape: f32[8,1], index: 1, kind: input, shape index: {}]
  %s2 = inlined_call_operand.vmem [shape: f32[8,256], index: 2, kind: input, shape index: {}]
  %s3 = inlined_call_operand.hbm [shape: f32[8,256], index: 3, kind: output, shape index: {}]
  %s4 = sld [smem:[#allocation0]]
  $region22: #{tpu_custom_call.1} parent=0
    _
  %s6 = ssub.s32 1, %s4
  %s7 = scalar_select 0, %s6, %s4
  $region1: #{tpu_custom_call.1} parent=0
    #allocation2 [shape = 'u8[8192]{0}', space=vmem, size = 0x2000, scoped, tag = 'output window, operand 0, single buffered']
    #allocation3 [shape = 's32[1]{0}', space=sflag, size = 0x4, scoped, tag = 'scoped memory for tpu_custom_call.1']
    %8 = vsyncpa [#allocation3], 0
    // Predicated region
    $region2: #{tpu_custom_call.1} parent=1 // pred_check
      _
    $region3: #{tpu_custom_call.1} parent=1 // pred_check_branch
      %10 = sbr.rel (0) target = $region5
    $region4: #{tpu_custom_call.1} parent=1 // pred_region
      _
    $region5: #{tpu_custom_call.1} parent=1 // pred_fallthru
      _
    // Predicated region
    $region6: #{tpu_custom_call.1} parent=1 // pred_check
      _
    $region7: #{tpu_custom_call.1} parent=1 // pred_check_branch
      %12 = sbr.rel (0) target = $region9
    $region8: #{tpu_custom_call.1} parent=1 // pred_region
      _
    $region9: #{tpu_custom_call.1} parent=1 // pred_fallthru
      _
    // Predicated region
    $region10: #{tpu_custom_call.1} parent=1 // pred_check
      _
    $region11: #{tpu_custom_call.1} parent=1 // pred_check_branch
      %14 = sbr.rel (0) target = $region13
    $region12: #{tpu_custom_call.1} parent=1 // pred_region
      _
    $region13: #{tpu_custom_call.1} parent=1 // pred_fallthru
      _
    %v15 = vld [vmem:[%s2] sm:$0xff]
    %v16 = vld [vmem:[%s2 + $0x8] sm:$0xff]
    %v17 = vld [vmem:[%s0] sm:$0xff]
    %19 = vset.pattern.permute.xlu0 0
    %20 = vperm.xlu0 %19, %v17
    %v21 = vpop.permute.xlu0 %20
    %v23 = vmul.f32 %v15, %v21
    %v24 = vmul.f32 %v16, %v21
    %v25 = vld [vmem:[%s1] sm:$0xff]
    %27 = vset.pattern.permute.xlu0 0
    %28 = vperm.xlu0 %27, %v25
    %v29 = vpop.permute.xlu0 %28
    %v31 = vadd.f32 %v23, %v29
    %v32 = vadd.f32 %v24, %v29
    %33 = vst [vmem:[#allocation2] sm:$0xff] %v31
    %34 = vst [vmem:[#allocation2 + $0x8] sm:$0xff] %v32
    // Predicated region
    $region14: #{tpu_custom_call.1} parent=1 // pred_check
      _
    $region15: #{tpu_custom_call.1} parent=1 // pred_check_branch
      %36 = sbr.rel (0) target = $region17
    $region16: #{tpu_custom_call.1} parent=1 // pred_region
      %s38 = ssub.s32 256, 256
      %39 = vsyncadd [#allocation3], %s38
      %s41 = sshll.u32 [#allocation2], 4
      %s42 = int_to_ptr.vmem [resolvable:$true] %s41
      %44 = dma.vmem_to_hbm [thread:$0]  %s42, 256, %s3, [#allocation3]
    $region17: #{tpu_custom_call.1} parent=1 // pred_fallthru
      _
    // Predicated region
    $region18: #{tpu_custom_call.1} parent=1 // pred_check
      _
    $region19: #{tpu_custom_call.1} parent=1 // pred_check_branch
      %46 = sbr.rel (0) target = $region21
    $region20: #{tpu_custom_call.1} parent=1 // pred_region
      %47 = dma.done [#allocation3], 256
    $region21: #{tpu_custom_call.1} parent=1 // pred_fallthru
      _
    %48 = vsyncpa [#allocation3], 1

</llo_original>
